<compile_context>
chip_gen: v7x
topology: tpu7x:2x2x1
jax: 0.10.0
libtpu: 0.0.40
codegen_flags: <defaults>
</compile_context>

<pallas_src>
import jax
import jax.numpy as jnp
from jax.experimental import pallas as pl
from jax.experimental.pallas import tpu as pltpu


def _round_up(x, m):
    return ((x + m - 1) // m) * m


def expert2_kernel(x_ref, w1_ref, b1_ref, w2_ref, b2_ref, o_ref):
    # x_ref:  (L, TB, D)   streamed activation tile
    # w1_ref: (L*D, Dp)    fc1 weight, resident, kernel layout (in -> out)
    # b1_ref: (1, Dp)      fc1 bias (f32)
    # w2_ref: (Dp, Dp)     fc2 weight, resident
    # b2_ref: (1, Dp)      fc2 bias (f32)
    # o_ref:  (TB, Dp)     lane-dense (padded) output tile
    L, _, D = x_ref.shape
    cdt = w1_ref.dtype  # MXU compute dtype (bf16 or f32)

    if L == 1 or D < 128:
        # Fold L into the contraction: one K = L*D matmul. The lane concat
        # (column l*D + d = x[l, :, d]) matches torch's flatten(1) of BLD and
        # rides the otherwise-idle XLU slot.
        if L == 1:
            lhs = x_ref[0]
        else:
            lhs = jnp.concatenate([x_ref[l] for l in range(L)], axis=-1)
        acc = jnp.dot(lhs.astype(cdt), w1_ref[...],
                      preferred_element_type=jnp.float32)
    else:
        # D already fills the MXU K dim: unrolled per-l matmuls, accumulator
        # seeded by the first one (no zero-fill).
        acc = jnp.dot(x_ref[0].astype(cdt), w1_ref[0:D, :],
                      preferred_element_type=jnp.float32)
        for l in range(1, L):
            acc += jnp.dot(x_ref[l].astype(cdt), w1_ref[l * D:(l + 1) * D, :],
                           preferred_element_type=jnp.float32)

    h = jnp.maximum(acc + b1_ref[...], 0.0)           # bias + ReLU in f32
    y = jnp.dot(h.astype(cdt), w2_ref[...],
                preferred_element_type=jnp.float32) + b2_ref[...]
    o_ref[...] = y.astype(o_ref.dtype)


def prepare_expert2_params(w1, b1, w2, b2, input_num, input_dim,
                           compute_dtype=jnp.bfloat16):
    """One-time conversion of torch-layout params to kernel layout.

    w1: (D, L*D) torch (out, in); b1: (D,); w2: (D, D); b2: (D,).
    Returns w1_r (L*D, Dp), b1_r (1, Dp), w2_r (Dp, Dp), b2_r (1, Dp).
    Weights default to bf16 (MXU-rate, half resident VMEM); biases stay f32.
    Store these once; do NOT re-transpose per call.
    """
    L, D = input_num, input_dim
    Dp = _round_up(D, 128)
    pad = Dp - D
    w1_r = jnp.pad(w1.T, ((0, 0), (0, pad))).astype(compute_dtype)    # (L*D, Dp)
    w2_r = jnp.pad(w2.T, ((0, pad), (0, pad))).astype(compute_dtype)  # (Dp, Dp)
    b1_r = jnp.pad(b1.astype(jnp.float32), (0, pad)).reshape(1, Dp)
    b2_r = jnp.pad(b2.astype(jnp.float32), (0, pad)).reshape(1, Dp)
    return w1_r, b1_r, w2_r, b2_r


def _spec(shape, index_map, buffers=None):
    """BlockSpec with an explicit pipeline depth, falling back if the kwarg
    is unavailable in this JAX version."""
    if buffers is None:
        return pl.BlockSpec(shape, index_map)
    try:
        return pl.BlockSpec(shape, index_map, pipeline_mode=pl.Buffered(buffers))
    except TypeError:
        return pl.BlockSpec(shape, index_map)


def _pick_batch_tile(B):
    """Batch tile: multiple of 8, >= 2 grid steps when possible (megacore),
    prefer a divisor of B (avoids a masked final store), <= 512 rows."""
    if B <= 16:
        return B
    target = min(512, _round_up(pl.cdiv(B, 2), 8))
    for cand in range(target, 7, -8):
        if B % cand == 0:
            return cand
    return target  # masked last tile; still correct


def expert2_forward(inp, w1_r, b1_r, w2_r, b2_r, return_padded=False):
    """inp: (L, B, D); params in kernel layout from prepare_expert2_params."""
    L, B, D = inp.shape
    Dp = w2_r.shape[0]
    LD = L * D

    TB = _pick_batch_tile(B)
    nb = pl.cdiv(B, TB)

    # Streamed-input pipeline depth: deeper when compute per tile is tiny.
    xbuf = 1 if nb == 1 else (3 if (D <= 256 and nb >= 3) else 2)

    # --- VMEM budget reflecting the real buffer counts -----------------------
    c_item = jnp.dtype(w1_r.dtype).itemsize
    a_item = jnp.dtype(inp.dtype).itemsize
    weight_bytes = (LD * Dp + Dp * Dp) * c_item + 2 * Dp * 4   # Buffered(1)
    x_bytes = xbuf * L * TB * D * a_item
    out_bytes = 2 * TB * Dp * a_item
    interm_bytes = 3 * TB * max(Dp, LD) * 4                    # lhs/acc/h (f32)
    vmem_needed = weight_bytes + x_bytes + out_bytes + interm_bytes + (2 << 20)
    try:
        vmem_cap = pltpu.get_tpu_info().vmem_capacity_bytes
    except Exception:
        vmem_cap = 64 << 20  # conservative (v7x per-TC)
    vmem_limit = max(16 << 20, min(int(vmem_needed), int(vmem_cap * 0.75)))

    cost = pl.CostEstimate(
        flops=2 * B * (LD * Dp + Dp * Dp),
        transcendentals=0,
        bytes_accessed=L * B * D * a_item + B * Dp * a_item + weight_bytes,
    )

    out_padded = pl.pallas_call(
        expert2_kernel,
        out_shape=jax.ShapeDtypeStruct((B, Dp), inp.dtype),
        grid=(nb,),
        in_specs=[
            _spec((L, TB, D), lambda b: (0, b, 0), buffers=xbuf),   # streamed x
            _spec((LD, Dp), lambda b: (0, 0), buffers=1),           # resident w1
            _spec((1, Dp), lambda b: (0, 0), buffers=1),            # resident b1
            _spec((Dp, Dp), lambda b: (0, 0), buffers=1),           # resident w2
            _spec((1, Dp), lambda b: (0, 0), buffers=1),            # resident b2
        ],
        out_specs=pl.BlockSpec((TB, Dp), lambda b: (b, 0)),
        compiler_params=pltpu.CompilerParams(
            dimension_semantics=("parallel",),
            vmem_limit_bytes=vmem_limit,
        ),
        cost_estimate=cost,
    )(inp, w1_r, b1_r, w2_r, b2_r)

    if return_padded or Dp == D:
        return out_padded
    # NOTE: this slice is a separate XLA op (re-reads B*Dp from HBM); pass
    # return_padded=True if the consumer can take the lane-padded buffer.
    return out_padded[:, :D]


def init_expert2_params(key, input_num, input_dim, dtype=jnp.float32):
    """Deterministic init mimicking nn.Linear defaults (uniform +/- 1/sqrt(fan_in))."""
    k1, k2, k3, k4 = jax.random.split(key, 4)
    fan1 = input_dim * input_num
    bound1 = 1.0 / (fan1 ** 0.5)
    w1 = jax.random.uniform(k1, (input_dim, fan1), dtype, -bound1, bound1)
    b1 = jax.random.uniform(k2, (input_dim,), dtype, -bound1, bound1)
    fan2 = input_dim
    bound2 = 1.0 / (fan2 ** 0.5)
    w2 = jax.random.uniform(k3, (input_dim, input_dim), dtype, -bound2, bound2)
    b2 = jax.random.uniform(k4, (input_dim,), dtype, -bound2, bound2)
    return w1, b1, w2, b2


if __name__ == "__main__":
    key = jax.random.PRNGKey(0)
    input_num = 4     # L
    input_dim = 32    # D
    batch = 8         # B

    kp, kx = jax.random.split(key)
    w1, b1, w2, b2 = init_expert2_params(kp, input_num, input_dim)
    x = jax.random.normal(kx, (input_num, batch, input_dim), jnp.float32)

    # plain-JAX reference (torch semantics)
    x2d = jnp.transpose(x, (1, 0, 2)).reshape(batch, input_num * input_dim)
    ref = jnp.maximum(x2d @ w1.T + b1, 0.0) @ w2.T + b2

    # f32 compute path: tight check
    p32 = prepare_expert2_params(w1, b1, w2, b2, input_num, input_dim,
                                 compute_dtype=jnp.float32)
    out = jax.block_until_ready(expert2_forward(x, *p32))
    assert out.shape == (batch, input_dim)
    assert jnp.allclose(out, ref, atol=1e-4, rtol=1e-4)

    # bf16 weights + bf16 matmuls (native MXU rate), f32 accumulation/bias:
    # deliberate activation-and-weight bf16 scheme -> loose tolerance.
    pbf = prepare_expert2_params(w1, b1, w2, b2, input_num, input_dim,
                                 compute_dtype=jnp.bfloat16)
    out_bf = jax.block_until_ready(expert2_forward(x, *pbf))
    assert out_bf.shape == (batch, input_dim)
    assert jnp.allclose(out_bf, ref, atol=1e-1, rtol=1e-1)

    print("KERNEL_OK")
</pallas_src>

<mosaic_0001>
module attributes {stable_mosaic.version = 11 : i64} {
  func.func @expert2_kernel(%arg0: i32, %arg1: memref<4x8x32xf32, #tpu.memory_space<vmem>>, %arg2: memref<128x128xf32, #tpu.memory_space<vmem>>, %arg3: memref<1x128xf32, #tpu.memory_space<vmem>>, %arg4: memref<128x128xf32, #tpu.memory_space<vmem>>, %arg5: memref<1x128xf32, #tpu.memory_space<vmem>>, %arg6: memref<8x128xf32, #tpu.memory_space<vmem>>) attributes {dimension_semantics = [#tpu.dimension_semantics<parallel>], iteration_bounds = array<i64: 1>, scalar_prefetch = 0 : i64, scratch_operands = 0 : i64, tpu.core_type = #tpu.core_type<tc>, window_params = [{pipeline_mode = #tpu.pipeline_mode<synchronous>, transform_indices = @transform_0, window_bounds = array<i64: 4, 8, 32>}, {pipeline_mode = #tpu.pipeline_mode<synchronous>, transform_indices = @transform_1, window_bounds = array<i64: 128, 128>}, {pipeline_mode = #tpu.pipeline_mode<synchronous>, transform_indices = @transform_2, window_bounds = array<i64: 1, 128>}, {pipeline_mode = #tpu.pipeline_mode<synchronous>, transform_indices = @transform_3, window_bounds = array<i64: 128, 128>}, {pipeline_mode = #tpu.pipeline_mode<synchronous>, transform_indices = @transform_4, window_bounds = array<i64: 1, 128>}, {transform_indices = @transform_5, window_bounds = array<i64: 8, 128>}]} {
    %c0 = arith.constant 0 : index
    %c0_0 = arith.constant 0 : index
    %c0_1 = arith.constant 0 : index
    %0 = vector.load %arg1[%c0, %c0_0, %c0_1] : memref<4x8x32xf32, #tpu.memory_space<vmem>>, vector<1x8x32xf32>
    %1 = vector.shape_cast %0 : vector<1x8x32xf32> to vector<8x32xf32>
    %c1 = arith.constant 1 : index
    %c0_2 = arith.constant 0 : index
    %c0_3 = arith.constant 0 : index
    %2 = vector.load %arg1[%c1, %c0_2, %c0_3] : memref<4x8x32xf32, #tpu.memory_space<vmem>>, vector<1x8x32xf32>
    %3 = vector.shape_cast %2 : vector<1x8x32xf32> to vector<8x32xf32>
    %c2 = arith.constant 2 : index
    %c0_4 = arith.constant 0 : index
    %c0_5 = arith.constant 0 : index
    %4 = vector.load %arg1[%c2, %c0_4, %c0_5] : memref<4x8x32xf32, #tpu.memory_space<vmem>>, vector<1x8x32xf32>
    %5 = vector.shape_cast %4 : vector<1x8x32xf32> to vector<8x32xf32>
    %c3 = arith.constant 3 : index
    %c0_6 = arith.constant 0 : index
    %c0_7 = arith.constant 0 : index
    %6 = vector.load %arg1[%c3, %c0_6, %c0_7] : memref<4x8x32xf32, #tpu.memory_space<vmem>>, vector<1x8x32xf32>
    %7 = vector.shape_cast %6 : vector<1x8x32xf32> to vector<8x32xf32>
    %8 = tpu.concatenate %1, %3, %5, %7 in 1 : vector<8x32xf32>, vector<8x32xf32>, vector<8x32xf32>, vector<8x32xf32> -> vector<8x128xf32>
    %c0_8 = arith.constant 0 : index
    %c0_9 = arith.constant 0 : index
    %9 = vector.load %arg2[%c0_8, %c0_9] : memref<128x128xf32, #tpu.memory_space<vmem>>, vector<128x128xf32>
    %cst = arith.constant dense<0.000000e+00> : vector<8x128xf32>
    %10 = tpu.matmul %8, %9, %cst {dimension_numbers = #tpu.dot_dimension_numbers<[1], [0], [0], [1], [0, 0, 1, 1], [], []>} : vector<8x128xf32>, vector<128x128xf32>, vector<8x128xf32> -> vector<8x128xf32>
    %c0_10 = arith.constant 0 : index
    %c0_11 = arith.constant 0 : index
    %11 = vector.load %arg3[%c0_10, %c0_11] : memref<1x128xf32, #tpu.memory_space<vmem>>, vector<1x128xf32>
    %12 = vector.broadcast %11 : vector<1x128xf32> to vector<8x128xf32>
    %13 = arith.addf %10, %12 : vector<8x128xf32>
    %cst_12 = arith.constant 0.000000e+00 : f32
    %14 = vector.broadcast %cst_12 : f32 to vector<8x128xf32>
    %15 = arith.maximumf %13, %14 : vector<8x128xf32>
    %c0_13 = arith.constant 0 : index
    %c0_14 = arith.constant 0 : index
    %16 = vector.load %arg4[%c0_13, %c0_14] : memref<128x128xf32, #tpu.memory_space<vmem>>, vector<128x128xf32>
    %cst_15 = arith.constant dense<0.000000e+00> : vector<8x128xf32>
    %17 = tpu.matmul %15, %16, %cst_15 {dimension_numbers = #tpu.dot_dimension_numbers<[1], [0], [0], [1], [0, 0, 1, 1], [], []>} : vector<8x128xf32>, vector<128x128xf32>, vector<8x128xf32> -> vector<8x128xf32>
    %c0_16 = arith.constant 0 : index
    %c0_17 = arith.constant 0 : index
    %18 = vector.load %arg5[%c0_16, %c0_17] : memref<1x128xf32, #tpu.memory_space<vmem>>, vector<1x128xf32>
    %19 = vector.broadcast %18 : vector<1x128xf32> to vector<8x128xf32>
    %20 = arith.addf %17, %19 : vector<8x128xf32>
    %c0_18 = arith.constant 0 : index
    %c0_19 = arith.constant 0 : index
    %21 = vector.load %arg6[%c0_18, %c0_19] : memref<8x128xf32, #tpu.memory_space<vmem>>, vector<8x128xf32>
    tpu.vector_store %arg6[%c0_18, %c0_19], %20 {strides = array<i32>} : memref<8x128xf32, #tpu.memory_space<vmem>>, vector<8x128xf32>,
    return
  }
  func.func @transform_0(%arg0: i32) -> (i32, i32, i32) {
    %c0_i32 = arith.constant 0 : i32
    %c0_i32_0 = arith.constant 0 : i32
    %c0_i32_1 = arith.constant 0 : i32
    return %c0_i32, %arg0, %c0_i32_0 : i32, i32, i32
  }
  func.func @transform_1(%arg0: i32) -> (i32, i32) {
    %c0_i32 = arith.constant 0 : i32
    %c0_i32_0 = arith.constant 0 : i32
    %c0_i32_1 = arith.constant 0 : i32
    return %c0_i32, %c0_i32_0 : i32, i32
  }
  func.func @transform_2(%arg0: i32) -> (i32, i32) {
    %c0_i32 = arith.constant 0 : i32
    %c0_i32_0 = arith.constant 0 : i32
    %c0_i32_1 = arith.constant 0 : i32
    return %c0_i32, %c0_i32_0 : i32, i32
  }
  func.func @transform_3(%arg0: i32) -> (i32, i32) {
    %c0_i32 = arith.constant 0 : i32
    %c0_i32_0 = arith.constant 0 : i32
    %c0_i32_1 = arith.constant 0 : i32
    return %c0_i32, %c0_i32_0 : i32, i32
  }
  func.func @transform_4(%arg0: i32) -> (i32, i32) {
    %c0_i32 = arith.constant 0 : i32
    %c0_i32_0 = arith.constant 0 : i32
    %c0_i32_1 = arith.constant 0 : i32
    return %c0_i32, %c0_i32_0 : i32, i32
  }
  func.func @transform_5(%arg0: i32) -> (i32, i32) {
    %c0_i32 = arith.constant 0 : i32
    %c0_i32_0 = arith.constant 0 : i32
    return %arg0, %c0_i32 : i32, i32
  }
}

</mosaic_0001>

<llo_original>
// kernel: tpu_custom_call.1
$region0: #{tpu_custom_call.1}
  #allocation0 [shape = 'u32[]', space=smem, size = 0x4, offset = 0x4, fixed_abs, tag = 'smem constant byte address 0x4 - core index']
  #allocation1 [shape = 'u32[144,128]{1,0:T(1,128)}', space=vmem, size = 0x12000, scoped, tag = 'internal scratch']
  %s0 = inlined_call_operand.hbm [shape: f32[4,8,32], index: 0, kind: input, shape index: {}]
  %s1 = inlined_call_operand.hbm [shape: f32[128,128], index: 1, kind: input, shape index: {}]
  %s2 = inlined_call_operand.vmem [shape: f32[1,128], index: 2, kind: input, shape index: {}]
  %s3 = inlined_call_operand.hbm [shape: f32[128,128], index: 3, kind: input, shape index: {}]
  %s4 = inlined_call_operand.vmem [shape: f32[1,128], index: 4, kind: input, shape index: {}]
  %s5 = inlined_call_operand.hbm [shape: f32[8,128], index: 5, kind: output, shape index: {}]
  %s6 = sld [smem:[#allocation0]]
  $region42: #{tpu_custom_call.1} parent=0
    _
  %s8 = ssub.s32 1, %s6
  %s9 = scalar_select 0, %s8, %s6
  $region1: #{tpu_custom_call.1} parent=0
    #allocation2 [shape = 'u8[16384]{0}', space=vmem, size = 0x4000, scoped, tag = 'input window, operand 0, single buffered']
    #allocation3 [shape = 's32[1]{0}', space=sflag, size = 0x4, scoped, tag = 'scoped memory for tpu_custom_call.1']
    #allocation4 [shape = 's32[1]{0}', space=sflag, size = 0x4, scoped, tag = 'scoped memory for tpu_custom_call.1']
    #allocation5 [shape = 'u8[65536]{0}', space=vmem, size = 0x10000, scoped, tag = 'input window, operand 1, single buffered']
    #allocation6 [shape = 's32[1]{0}', space=sflag, size = 0x4, scoped, tag = 'scoped memory for tpu_custom_call.1']
    #allocation7 [shape = 'u8[65536]{0}', space=vmem, size = 0x10000, scoped, tag = 'input window, operand 3, single buffered']
    #allocation8 [shape = 'u8[4096]{0}', space=vmem, size = 0x1000, scoped, tag = 'output window, operand 0, single buffered']
    %10 = vsyncpa [#allocation3], 0
    %11 = vsyncpa [#allocation6], 0
    %12 = vsyncpa [#allocation4], 0
    // Predicated region
    $region2: #{tpu_custom_call.1} parent=1 // pred_check
      _
    $region3: #{tpu_custom_call.1} parent=1 // pred_check_branch
      %14 = sbr.rel (0) target = $region5
    $region4: #{tpu_custom_call.1} parent=1 // pred_region
      %s16 = ssub.s32 512, 512
      %17 = vsyncadd [#allocation3], %s16
      %s18 = sshll.u32 [#allocation2], 4
      %s19 = int_to_ptr.vmem [resolvable:$true] %s18
      %24 = dma.hbm_to_vmem [thread:$0]  %s0, 512, %s19, [#allocation3], 128, 128, 8
    $region5: #{tpu_custom_call.1} parent=1 // pred_fallthru
      _
    // Predicated region
    $region6: #{tpu_custom_call.1} parent=1 // pred_check
      _
    $region7: #{tpu_custom_call.1} parent=1 // pred_check_branch
      %26 = sbr.rel (0) target = $region9
    $region8: #{tpu_custom_call.1} parent=1 // pred_region
      %s28 = ssub.s32 2048, 2048
      %29 = vsyncadd [#allocation6], %s28
      %s30 = sshll.u32 [#allocation5], 4
      %s31 = int_to_ptr.vmem [resolvable:$true] %s30
      %36 = dma.hbm_to_vmem [thread:$0]  %s1, 2048, %s31, [#allocation6], 128, 128, 8
    $region9: #{tpu_custom_call.1} parent=1 // pred_fallthru
      _
    // Predicated region
    $region10: #{tpu_custom_call.1} parent=1 // pred_check
      _
    $region11: #{tpu_custom_call.1} parent=1 // pred_check_branch
      %38 = sbr.rel (0) target = $region13
    $region12: #{tpu_custom_call.1} parent=1 // pred_region
      _
    $region13: #{tpu_custom_call.1} parent=1 // pred_fallthru
      _
    // Predicated region
    $region14: #{tpu_custom_call.1} parent=1 // pred_check
      _
    $region15: #{tpu_custom_call.1} parent=1 // pred_check_branch
      %40 = sbr.rel (0) target = $region17
    $region16: #{tpu_custom_call.1} parent=1 // pred_region
      %s42 = ssub.s32 2048, 2048
      %43 = vsyncadd [#allocation6], %s42
      %s44 = sshll.u32 [#allocation7], 4
      %s45 = int_to_ptr.vmem [resolvable:$true] %s44
      %50 = dma.hbm_to_vmem [thread:$0]  %s3, 2048, %s45, [#allocation6], 128, 128, 8
    $region17: #{tpu_custom_call.1} parent=1 // pred_fallthru
      _
    // Predicated region
    $region18: #{tpu_custom_call.1} parent=1 // pred_check
      _
    $region19: #{tpu_custom_call.1} parent=1 // pred_check_branch
      %52 = sbr.rel (0) target = $region21
    $region20: #{tpu_custom_call.1} parent=1 // pred_region
      _
    $region21: #{tpu_custom_call.1} parent=1 // pred_fallthru
      _
    // Predicated region
    $region22: #{tpu_custom_call.1} parent=1 // pred_check
      _
    $region23: #{tpu_custom_call.1} parent=1 // pred_check_branch
      %54 = sbr.rel (0) target = $region25
    $region24: #{tpu_custom_call.1} parent=1 // pred_region
      %55 = dma.done [#allocation3], 512
    $region25: #{tpu_custom_call.1} parent=1 // pred_fallthru
      _
    // Predicated region
    $region26: #{tpu_custom_call.1} parent=1 // pred_check
      _
    $region27: #{tpu_custom_call.1} parent=1 // pred_check_branch
      %57 = sbr.rel (0) target = $region29
    $region28: #{tpu_custom_call.1} parent=1 // pred_region
      %58 = dma.done [#allocation6], 2048
    $region29: #{tpu_custom_call.1} parent=1 // pred_fallthru
      _
    // Predicated region
    $region30: #{tpu_custom_call.1} parent=1 // pred_check
      _
    $region31: #{tpu_custom_call.1} parent=1 // pred_check_branch
      %60 = sbr.rel (0) target = $region33
    $region32: #{tpu_custom_call.1} parent=1 // pred_region
      %61 = dma.done [#allocation6], 2048
    $region33: #{tpu_custom_call.1} parent=1 // pred_fallthru
      _
    %v62 = vld [vmem:[#allocation2] sm:$0xff]
    %s63 = scalar_lea.vmem [#allocation2], 8
    %v64 = vld [vmem:[%s63] sm:$0xff]
    %s65 = scalar_lea.vmem [#allocation2], 16
    %v66 = vld [vmem:[%s65] sm:$0xff]
    %s67 = scalar_lea.vmem [#allocation2], 24
    %v68 = vld [vmem:[%s67] sm:$0xff]
    %70 = vrot.lane.b32.xlu0 %v64, 32
    %v71 = vpop.permute.xlu0 %70
    %74 = vrot.lane.b32.xlu0 %v66, 64
    %v75 = vpop.permute.xlu0 %74
    %78 = vrot.lane.b32.xlu0 %v68, 96
    %v79 = vpop.permute.xlu0 %78
    %vm81 = vcmask 261120
    %v82 = vsel %vm81, %v62, %v71
    %vm83 = vcmask 523264
    %v84 = vsel %vm83, %v82, %v75
    %vm85 = vcmask 785408
    %v86 = vsel %vm85, %v84, %v79
    %v87 = vld [vmem:[#allocation5] sm:$0xff]
    %v88 = vld [vmem:[#allocation5 + $0x8] sm:$0xff]
    %v89 = vld [vmem:[#allocation5 + $0x10] sm:$0xff]
    %v90 = vld [vmem:[#allocation5 + $0x18] sm:$0xff]
    %v91 = vld [vmem:[#allocation5 + $0x20] sm:$0xff]
    %v92 = vld [vmem:[#allocation5 + $0x28] sm:$0xff]
    %v93 = vld [vmem:[#allocation5 + $0x30] sm:$0xff]
    %v94 = vld [vmem:[#allocation5 + $0x38] sm:$0xff]
    %v95 = vld [vmem:[#allocation5 + $0x40] sm:$0xff]
    %v96 = vld [vmem:[#allocation5 + $0x48] sm:$0xff]
    %v97 = vld [vmem:[#allocation5 + $0x50] sm:$0xff]
    %v98 = vld [vmem:[#allocation5 + $0x58] sm:$0xff]
    %v99 = vld [vmem:[#allocation5 + $0x60] sm:$0xff]
    %v100 = vld [vmem:[#allocation5 + $0x68] sm:$0xff]
    %v101 = vld [vmem:[#allocation5 + $0x70] sm:$0xff]
    %v102 = vld [vmem:[#allocation5 + $0x78] sm:$0xff]
    %v103 = vld [vmem:[%s2] sm:$0x1]
    %v105 = vlaneseq
    %v106 = vshrl.u32 %v105, 7
    %v107 = vsub.s32 0, %v106
    %v108 = vrot.slane %v103, %v107
    %110 = vmatprep.subr.mxu0 0.0
    %111 = vmatpush1.msra.mxu0 %v87
    %112 = vmatprep.subr.mxu0 0.0
    %113 = vmatpush1.msra.mxu0 %v88
    %114 = vmatprep.subr.mxu0 0.0
    %115 = vmatpush1.msra.mxu0 %v89
    %116 = vmatprep.subr.mxu0 0.0
    %117 = vmatpush1.msra.mxu0 %v90
    %118 = vmatprep.subr.mxu0 0.0
    %119 = vmatpush1.msra.mxu0 %v91
    %120 = vmatprep.subr.mxu0 0.0
    %121 = vmatpush1.msra.mxu0 %v92
    %122 = vmatprep.subr.mxu0 0.0
    %123 = vmatpush1.msra.mxu0 %v93
    %124 = vmatprep.subr.mxu0 0.0
    %125 = vmatpush1.msra.mxu0 %v94
    %126 = vmatprep.subr.mxu0 0.0
    %127 = vmatpush1.msra.mxu0 %v95
    %128 = vmatprep.subr.mxu0 0.0
    %129 = vmatpush1.msra.mxu0 %v96
    %130 = vmatprep.subr.mxu0 0.0
    %131 = vmatpush1.msra.mxu0 %v97
    %132 = vmatprep.subr.mxu0 0.0
    %133 = vmatpush1.msra.mxu0 %v98
    %134 = vmatprep.subr.mxu0 0.0
    %135 = vmatpush1.msra.mxu0 %v99
    %136 = vmatprep.subr.mxu0 0.0
    %137 = vmatpush1.msra.mxu0 %v100
    %138 = vmatprep.subr.mxu0 0.0
    %139 = vmatpush1.msra.mxu0 %v101
    %140 = vmatprep.subr.mxu0 0.0
    %141 = vmatpush1.msra.mxu0 %v102
    %142 = vmatprep.subr.mxu0 0.0
    %143 = vmatpush1.msra.mxu0 0.0
    %144 = vmatprep.subr.mxu0 0.0
    %145 = vmatpush1.msra.mxu0 0.0
    %146 = vmatprep.subr.mxu0 0.0
    %147 = vmatpush1.msra.mxu0 0.0
    %148 = vmatprep.subr.mxu0 0.0
    %149 = vmatpush1.msra.mxu0 0.0
    %150 = vmatprep.subr.mxu0 0.0
    %151 = vmatpush1.msra.mxu0 0.0
    %152 = vmatprep.subr.mxu0 0.0
    %153 = vmatpush1.msra.mxu0 0.0
    %154 = vmatprep.subr.mxu0 0.0
    %155 = vmatpush1.msra.mxu0 0.0
    %156 = vmatprep.subr.mxu0 0.0
    %157 = vmatpush1.msra.mxu0 0.0
    %158 = vmatprep.subr.mxu0 0.0
    %159 = vmatpush1.msra.mxu0 0.0
    %160 = vmatprep.subr.mxu0 0.0
    %161 = vmatpush1.msra.mxu0 0.0
    %162 = vmatprep.subr.mxu0 0.0
    %163 = vmatpush1.msra.mxu0 0.0
    %164 = vmatprep.subr.mxu0 0.0
    %165 = vmatpush1.msra.mxu0 0.0
    %166 = vmatprep.subr.mxu0 0.0
    %167 = vmatpush1.msra.mxu0 0.0
    %168 = vmatprep.subr.mxu0 0.0
    %169 = vmatpush1.msra.mxu0 0.0
    %170 = vmatprep.subr.mxu0 0.0
    %171 = vmatpush1.msra.mxu0 0.0
    %172 = vmatprep.subr.mxu0 0.0
    %173 = vmatpush1.msra.mxu0 0.0
    %174 = vmatprep.mubr.f32.mxu0 0.0
    %175 = vmatmul.mubr.f32.gmra.mrb[0].mxu0 %v86
    %v176 = vpop.f32.mrb[0].mxu0
    %v177 = vadd.f32 %v108, %v176
    %v178 = vpop.f32.mrb[0].mxu0
    %179 = vdwg.mxu0
    %v180 = vmax.f32 %v177, 0.0
    %v181 = vld [vmem:[#allocation7] sm:$0xff]
    %v182 = vld [vmem:[#allocation7 + $0x8] sm:$0xff]
    %v183 = vld [vmem:[#allocation7 + $0x10] sm:$0xff]
    %v184 = vld [vmem:[#allocation7 + $0x18] sm:$0xff]
    %v185 = vld [vmem:[#allocation7 + $0x20] sm:$0xff]
    %v186 = vld [vmem:[#allocation7 + $0x28] sm:$0xff]
    %v187 = vld [vmem:[#allocation7 + $0x30] sm:$0xff]
    %v188 = vld [vmem:[#allocation7 + $0x38] sm:$0xff]
    %v189 = vld [vmem:[#allocation7 + $0x40] sm:$0xff]
    %v190 = vld [vmem:[#allocation7 + $0x48] sm:$0xff]
    %v191 = vld [vmem:[#allocation7 + $0x50] sm:$0xff]
    %v192 = vld [vmem:[#allocation7 + $0x58] sm:$0xff]
    %v193 = vld [vmem:[#allocation7 + $0x60] sm:$0xff]
    %v194 = vld [vmem:[#allocation7 + $0x68] sm:$0xff]
    %v195 = vld [vmem:[#allocation7 + $0x70] sm:$0xff]
    %v196 = vld [vmem:[#allocation7 + $0x78] sm:$0xff]
    %v197 = vld [vmem:[%s4] sm:$0x1]
    %v199 = vlaneseq
    %v200 = vshrl.u32 %v199, 7
    %v201 = vsub.s32 0, %v200
    %v202 = vrot.slane %v197, %v201
    %204 = vmatprep.subr.mxu0 0.0
    %205 = vmatpush1.msra.mxu0 %v181
    %206 = vmatprep.subr.mxu0 0.0
    %207 = vmatpush1.msra.mxu0 %v182
    %208 = vmatprep.subr.mxu0 0.0
    %209 = vmatpush1.msra.mxu0 %v183
    %210 = vmatprep.subr.mxu0 0.0
    %211 = vmatpush1.msra.mxu0 %v184
    %212 = vmatprep.subr.mxu0 0.0
    %213 = vmatpush1.msra.mxu0 %v185
    %214 = vmatprep.subr.mxu0 0.0
    %215 = vmatpush1.msra.mxu0 %v186
    %216 = vmatprep.subr.mxu0 0.0
    %217 = vmatpush1.msra.mxu0 %v187
    %218 = vmatprep.subr.mxu0 0.0
    %219 = vmatpush1.msra.mxu0 %v188
    %220 = vmatprep.subr.mxu0 0.0
    %221 = vmatpush1.msra.mxu0 %v189
    %222 = vmatprep.subr.mxu0 0.0
    %223 = vmatpush1.msra.mxu0 %v190
    %224 = vmatprep.subr.mxu0 0.0
    %225 = vmatpush1.msra.mxu0 %v191
    %226 = vmatprep.subr.mxu0 0.0
    %227 = vmatpush1.msra.mxu0 %v192
    %228 = vmatprep.subr.mxu0 0.0
    %229 = vmatpush1.msra.mxu0 %v193
    %230 = vmatprep.subr.mxu0 0.0
    %231 = vmatpush1.msra.mxu0 %v194
    %232 = vmatprep.subr.mxu0 0.0
    %233 = vmatpush1.msra.mxu0 %v195
    %234 = vmatprep.subr.mxu0 0.0
    %235 = vmatpush1.msra.mxu0 %v196
    %236 = vmatprep.subr.mxu0 0.0
    %237 = vmatpush1.msra.mxu0 0.0
    %238 = vmatprep.subr.mxu0 0.0
    %239 = vmatpush1.msra.mxu0 0.0
    %240 = vmatprep.subr.mxu0 0.0
    %241 = vmatpush1.msra.mxu0 0.0
    %242 = vmatprep.subr.mxu0 0.0
    %243 = vmatpush1.msra.mxu0 0.0
    %244 = vmatprep.subr.mxu0 0.0
    %245 = vmatpush1.msra.mxu0 0.0
    %246 = vmatprep.subr.mxu0 0.0
    %247 = vmatpush1.msra.mxu0 0.0
    %248 = vmatprep.subr.mxu0 0.0
    %249 = vmatpush1.msra.mxu0 0.0
    %250 = vmatprep.subr.mxu0 0.0
    %251 = vmatpush1.msra.mxu0 0.0
    %252 = vmatprep.subr.mxu0 0.0
    %253 = vmatpush1.msra.mxu0 0.0
    %254 = vmatprep.subr.mxu0 0.0
    %255 = vmatpush1.msra.mxu0 0.0
    %256 = vmatprep.subr.mxu0 0.0
    %257 = vmatpush1.msra.mxu0 0.0
    %258 = vmatprep.subr.mxu0 0.0
    %259 = vmatpush1.msra.mxu0 0.0
    %260 = vmatprep.subr.mxu0 0.0
    %261 = vmatpush1.msra.mxu0 0.0
    %262 = vmatprep.subr.mxu0 0.0
    %263 = vmatpush1.msra.mxu0 0.0
    %264 = vmatprep.subr.mxu0 0.0
    %265 = vmatpush1.msra.mxu0 0.0
    %266 = vmatprep.subr.mxu0 0.0
    %267 = vmatpush1.msra.mxu0 0.0
    %268 = vmatprep.mubr.f32.mxu0 0.0
    %269 = vmatmul.mubr.f32.gmra.mrb[0].mxu0 %v180
    %v270 = vpop.f32.mrb[0].mxu0
    %v271 = vadd.f32 %v202, %v270
    %v272 = vpop.f32.mrb[0].mxu0
    %273 = vdwg.mxu0
    %274 = vst [vmem:[#allocation8] sm:$0xff] %v271
    // Predicated region
    $region34: #{tpu_custom_call.1} parent=1 // pred_check
      _
    $region35: #{tpu_custom_call.1} parent=1 // pred_check_branch
      %276 = sbr.rel (0) target = $region37
    $region36: #{tpu_custom_call.1} parent=1 // pred_region
      %s278 = ssub.s32 128, 128
      %279 = vsyncadd [#allocation4], %s278
      %s281 = sshll.u32 [#allocation8], 4
      %s282 = int_to_ptr.vmem [resolvable:$true] %s281
      %284 = dma.vmem_to_hbm [thread:$0]  %s282, 128, %s5, [#allocation4]
    $region37: #{tpu_custom_call.1} parent=1 // pred_fallthru
      _
    // Predicated region
    $region38: #{tpu_custom_call.1} parent=1 // pred_check
      _
    $region39: #{tpu_custom_call.1} parent=1 // pred_check_branch
      %286 = sbr.rel (0) target = $region41
    $region40: #{tpu_custom_call.1} parent=1 // pred_region
      %287 = dma.done [#allocation4], 128
    $region41: #{tpu_custom_call.1} parent=1 // pred_fallthru
      _
    %288 = vsyncpa [#allocation3], 1
    %289 = vsyncpa [#allocation6], 1
    %290 = vsyncpa [#allocation4], 1

</llo_original>
